<compile_context>
chip_gen: v5e
topology: v5e:2x2
jax: 0.10.0
libtpu: 0.0.40
codegen_flags: <defaults>
</compile_context>

<pallas_src>
import functools
import re

import jax
import jax.numpy as jnp
from jax.experimental import pallas as pl
from jax.experimental.pallas import tpu as pltpu


def _round_up(x, m):
    return ((x + m - 1) // m) * m


def _tpu_generation():
    """Best-effort TPU generation from device_kind ('TPU v6e' -> 6); 0 if unknown."""
    try:
        kind = jax.devices()[0].device_kind.lower()
        m = re.search(r"v(\d+)", kind)
        if m:
            return int(m.group(1))
    except Exception:
        pass
    return 0


def _vmem_capacity_bytes(gen):
    try:
        cap = int(pltpu.get_tpu_info().vmem_capacity_bytes)
        if cap > 0:
            return cap
    except Exception:
        pass
    # Fallback: v7x has 64 MiB per TensorCore, earlier generations 128 MiB.
    return (64 << 20) if gen >= 7 else (128 << 20)


def _gaussian_finer_kernel(x_ref, w_ref, b_ref, o_ref, *, neg_s2, act_dtype):
    # z = x @ W^T + b  (MXU matmul, f32 accumulate; bias added in f32)
    z = jnp.dot(x_ref[...], w_ref[...], preferred_element_type=jnp.float32)
    z = (z + b_ref[...]).astype(act_dtype)          # epilogue dtype (f32 or bf16)
    # FINER variable-periodic pre-scaling: fin = (|z| + 1) * z
    fin = (jnp.abs(z) + 1.0) * z
    # Gaussian activation with folded constant: exp(-(scale*fin)^2) = exp(neg_s2*fin^2)
    o_ref[...] = jnp.exp(neg_s2 * (fin * fin)).astype(o_ref.dtype)


def prepare_gaussian_finer_params(weight, bias, compute_dtype=jnp.bfloat16):
    """Hoisted once per layer: transpose+cast W, reshape bias to a (1, out_f) f32 row."""
    w_t = jnp.asarray(weight).T.astype(compute_dtype)            # (in_f, out_f)
    b2d = jnp.asarray(bias).reshape(1, -1).astype(jnp.float32)   # (1, out_f)
    return w_t, b2d


def gaussian_finer_layer(x, w_t, b2d, *, scale=30.0, block_n=None,
                         out_dtype=None, vmem_limit_bytes=None):
    """x: (N, in_f); w_t: (in_f, out_f) pre-transposed (its dtype = compute dtype);
    b2d: (1, out_f) f32.  out_dtype defaults to the compute dtype (bf16 fast path);
    pass out_dtype=jnp.float32 for the full-quality writeback path."""
    n, in_f = x.shape
    in_f2, out_f = w_t.shape
    assert in_f == in_f2 and b2d.shape == (1, out_f)

    compute_dtype = w_t.dtype
    if out_dtype is None:
        out_dtype = compute_dtype

    gen = _tpu_generation()
    vmem_cap = _vmem_capacity_bytes(gen)
    # Working-set budget: ~half of VMEM, capped (24 MiB on v7x, 56 MiB on v5e/v6e).
    budget = min(max(vmem_cap // 2 - (8 << 20), 24 << 20), 56 << 20)

    if block_n is None:
        block_n = 4096 if vmem_cap >= (96 << 20) else 2048

    x_bytes = jnp.dtype(compute_dtype).itemsize
    o_bytes = jnp.dtype(out_dtype).itemsize
    sub = 16 if min(x_bytes, o_bytes) < 4 else 8     # sublane packing granularity

    # Row tile: as large as the budget allows; pl.cdiv grid handles the ragged
    # tail (no wrapper-side padding pass over x).
    bn = min(_round_up(block_n, sub), _round_up(n, sub))

    # v7x has 2 TensorCores per chip: keep >= 2 row blocks so both get work.
    if gen >= 7 and n > 2 * sub:
        bn = min(bn, _round_up(pl.cdiv(n, 2), sub))

    # Prefer the full (lane-dense) output width; only tile out_f if VMEM forces it.
    tn = out_f

    def _tile_bytes(rows, cols):
        return (2 * rows * in_f * x_bytes      # double-buffered x tile
                + 2 * rows * cols * o_bytes    # double-buffered out tile
                + 2 * in_f * cols * x_bytes    # W column tile (resident if cols==out_f)
                + 2 * cols * 4)                # bias row

    while _tile_bytes(bn, tn) > budget and bn > 8 * sub:
        bn = _round_up(bn // 2, sub)
    while _tile_bytes(bn, tn) > budget and tn % 256 == 0:
        tn //= 2

    grid = (pl.cdiv(n, bn), pl.cdiv(out_f, tn))

    if vmem_limit_bytes is None:
        vmem_limit_bytes = int(min(
            max(_tile_bytes(bn, tn) * 3 // 2 + (2 << 20), 32 << 20),
            vmem_cap - (12 << 20)))

    # bf16 end-to-end chaining: only the first layer of an INR stack pays a cast.
    xc = x if x.dtype == compute_dtype else x.astype(compute_dtype)

    # bf16 VPU/EUP epilogue on v6e/v7x when writing bf16 anyway; f32 on v5e/unknown.
    act_dtype = (jnp.bfloat16
                 if (jnp.dtype(out_dtype) == jnp.dtype(jnp.bfloat16) and gen >= 6)
                 else jnp.float32)

    kernel = functools.partial(_gaussian_finer_kernel,
                               neg_s2=-(float(scale) * float(scale)),
                               act_dtype=act_dtype)

    cost = pl.CostEstimate(
        flops=2 * n * in_f * out_f,
        transcendentals=n * out_f,
        bytes_accessed=(n * in_f * x_bytes + in_f * out_f * x_bytes
                        + out_f * 4 + n * out_f * o_bytes),
    )

    return pl.pallas_call(
        kernel,
        out_shape=jax.ShapeDtypeStruct((n, out_f), out_dtype),
        grid=grid,
        in_specs=[
            pl.BlockSpec((bn, in_f), lambda i, j: (i, 0)),   # x row tile
            pl.BlockSpec((in_f, tn), lambda i, j: (0, j)),   # W^T column tile
            pl.BlockSpec((1, tn), lambda i, j: (0, j)),      # bias row
        ],
        out_specs=pl.BlockSpec((bn, tn), lambda i, j: (i, j)),
        compiler_params=pltpu.CompilerParams(
            dimension_semantics=("parallel", "parallel"),
            vmem_limit_bytes=vmem_limit_bytes,
        ),
        cost_estimate=cost,
    )(xc, w_t, b2d)


def init_gaussian_finer_params(key, in_features, out_features, omega_f=2.5,
                               first_k=10, hidden_k=10, is_first=False):
    """Deterministic FINER-style init (Initializer.gaussian_finer_init)."""
    kw, kb = jax.random.split(key)
    if is_first:
        w_bound = 1.0 / in_features
        k = first_k
    else:
        w_bound = jnp.sqrt(6.0 / in_features) / omega_f
        k = hidden_k
    weight = jax.random.uniform(kw, (out_features, in_features),
                                jnp.float32, minval=-w_bound, maxval=w_bound)
    bias = jax.random.uniform(kb, (out_features,),
                              jnp.float32, minval=-k, maxval=k)
    return weight, bias


def reference_forward(x, weight, bias, scale=30.0):
    z = jnp.dot(x, weight.T, precision=jax.lax.Precision.HIGHEST) + bias
    fin = (jnp.abs(z) + 1.0) * z
    return jnp.exp(-jnp.square(scale * fin))


if __name__ == "__main__":
    key = jax.random.PRNGKey(0)
    k_x, k_p = jax.random.split(key)

    # Small INR-style point batch; N deliberately NOT a multiple of the tile size
    # to exercise the ragged (cdiv) grid path.
    N, IN_F, OUT_F = 300, 64, 128
    x = jax.random.uniform(k_x, (N, IN_F), jnp.float32, minval=-1.0, maxval=1.0)
    weight, bias = init_gaussian_finer_params(
        k_p, IN_F, OUT_F, omega_f=2.5, first_k=10, hidden_k=10, is_first=False)

    # ---- f32 quality path (module-faithful writeback) ----
    w_t32, b2d = prepare_gaussian_finer_params(weight, bias, jnp.float32)
    out32 = gaussian_finer_layer(x, w_t32, b2d, scale=30.0, out_dtype=jnp.float32)
    out32 = jax.block_until_ready(out32)
    ref32 = reference_forward(x, weight, bias, scale=30.0)
    assert out32.shape == (N, OUT_F) and out32.dtype == jnp.float32
    assert jnp.allclose(out32, ref32, atol=1e-3, rtol=1e-3)

    # ---- bf16 fast path (default: bf16 MXU operands, bf16 writeback) ----
    w_tb, _ = prepare_gaussian_finer_params(weight, bias, jnp.bfloat16)
    outb = gaussian_finer_layer(x, w_tb, b2d, scale=30.0)   # bf16 compute + out
    outb = jax.block_until_ready(outb)
    # Reference with the same bf16 input rounding (accumulation stays f32).
    refb = reference_forward(
        x.astype(jnp.bfloat16).astype(jnp.float32),
        weight.astype(jnp.bfloat16).astype(jnp.float32), bias, scale=30.0)
    assert outb.shape == (N, OUT_F) and outb.dtype == jnp.bfloat16
    assert jnp.allclose(outb.astype(jnp.float32), refb, atol=4e-2, rtol=0.0)

    print("KERNEL_OK")
</pallas_src>

<mosaic_0001>
module attributes {stable_mosaic.version = 11 : i64} {
  func.func @_gaussian_finer_kernel(%arg0: i32, %arg1: i32, %arg2: memref<304x64xf32, #tpu.memory_space<vmem>>, %arg3: memref<64x128xf32, #tpu.memory_space<vmem>>, %arg4: memref<1x128xf32, #tpu.memory_space<vmem>>, %arg5: memref<304x128xf32, #tpu.memory_space<vmem>>) attributes {dimension_semantics = [#tpu.dimension_semantics<parallel>, #tpu.dimension_semantics<parallel>], iteration_bounds = array<i64: 1, 1>, scalar_prefetch = 0 : i64, scratch_operands = 0 : i64, tpu.core_type = #tpu.core_type<tc>, window_params = [{transform_indices = @transform_0, window_bounds = array<i64: 304, 64>}, {transform_indices = @transform_1, window_bounds = array<i64: 64, 128>}, {transform_indices = @transform_2, window_bounds = array<i64: 1, 128>}, {transform_indices = @transform_3, window_bounds = array<i64: 304, 128>}]} {
    %c0 = arith.constant 0 : index
    %c0_0 = arith.constant 0 : index
    %0 = vector.load %arg2[%c0, %c0_0] : memref<304x64xf32, #tpu.memory_space<vmem>>, vector<304x64xf32>
    %c0_1 = arith.constant 0 : index
    %c0_2 = arith.constant 0 : index
    %1 = vector.load %arg3[%c0_1, %c0_2] : memref<64x128xf32, #tpu.memory_space<vmem>>, vector<64x128xf32>
    %cst = arith.constant dense<0.000000e+00> : vector<304x128xf32>
    %2 = tpu.matmul %0, %1, %cst {dimension_numbers = #tpu.dot_dimension_numbers<[1], [0], [0], [1], [0, 0, 1, 1], [], []>} : vector<304x64xf32>, vector<64x128xf32>, vector<304x128xf32> -> vector<304x128xf32>
    %c0_3 = arith.constant 0 : index
    %c0_4 = arith.constant 0 : index
    %3 = vector.load %arg4[%c0_3, %c0_4] : memref<1x128xf32, #tpu.memory_space<vmem>>, vector<1x128xf32>
    %4 = vector.broadcast %3 : vector<1x128xf32> to vector<304x128xf32>
    %5 = arith.addf %2, %4 : vector<304x128xf32>
    %6 = math.absf %5 : vector<304x128xf32>
    %cst_5 = arith.constant 1.000000e+00 : f32
    %7 = vector.broadcast %cst_5 : f32 to vector<304x128xf32>
    %8 = arith.addf %6, %7 : vector<304x128xf32>
    %9 = arith.mulf %8, %5 : vector<304x128xf32>
    %10 = arith.mulf %9, %9 : vector<304x128xf32>
    %cst_6 = arith.constant -9.000000e+02 : f32
    %11 = vector.broadcast %cst_6 : f32 to vector<304x128xf32>
    %12 = arith.mulf %11, %10 : vector<304x128xf32>
    %13 = math.exp %12 : vector<304x128xf32>
    %c0_7 = arith.constant 0 : index
    %c0_8 = arith.constant 0 : index
    %14 = vector.load %arg5[%c0_7, %c0_8] : memref<304x128xf32, #tpu.memory_space<vmem>>, vector<304x128xf32>
    tpu.vector_store %arg5[%c0_7, %c0_8], %13 {strides = array<i32>} : memref<304x128xf32, #tpu.memory_space<vmem>>, vector<304x128xf32>,
    return
  }
  func.func @transform_0(%arg0: i32, %arg1: i32) -> (i32, i32) {
    %c0_i32 = arith.constant 0 : i32
    %c0_i32_0 = arith.constant 0 : i32
    return %arg0, %c0_i32 : i32, i32
  }
  func.func @transform_1(%arg0: i32, %arg1: i32) -> (i32, i32) {
    %c0_i32 = arith.constant 0 : i32
    %c0_i32_0 = arith.constant 0 : i32
    return %c0_i32, %arg1 : i32, i32
  }
  func.func @transform_2(%arg0: i32, %arg1: i32) -> (i32, i32) {
    %c0_i32 = arith.constant 0 : i32
    %c0_i32_0 = arith.constant 0 : i32
    return %c0_i32, %arg1 : i32, i32
  }
  func.func @transform_3(%arg0: i32, %arg1: i32) -> (i32, i32) {
    %c0_i32 = arith.constant 0 : i32
    return %arg0, %arg1 : i32, i32
  }
}

</mosaic_0001>

<llo_original>
// kernel: tpu_custom_call.1
$region0: #{tpu_custom_call.1}
  #allocation0 [shape = 'u32[]', space=smem, size = 0x4, offset = 0x4, fixed_abs, tag = 'smem constant byte address 0x4 - core index']
  #allocation1 [shape = 'u32[72,128]{1,0:T(1,128)}', space=vmem, size = 0x9000, scoped, tag = 'internal scratch']
  %s0 = inlined_call_operand.vmem [shape: f32[300,64], index: 0, kind: input, shape index: {}]
  %s1 = inlined_call_operand.vmem [shape: f32[64,128], index: 1, kind: input, shape index: {}]
  %s2 = inlined_call_operand.vmem [shape: f32[1,128], index: 2, kind: input, shape index: {}]
  %s3 = inlined_call_operand.hbm [shape: f32[300,128], index: 3, kind: output, shape index: {}]
  %s4 = sld [smem:[#allocation0]]
  $region22: #{tpu_custom_call.1} parent=0
    _
  %s6 = ssub.s32 1, %s4
  %s7 = scalar_select 0, %s6, %s4
  $region1: #{tpu_custom_call.1} parent=0
    #allocation2 [shape = 'u8[155648]{0}', space=vmem, size = 0x26000, scoped, tag = 'output window, operand 0, single buffered']
    #allocation3 [shape = 's32[1]{0}', space=sflag, size = 0x4, scoped, tag = 'scoped memory for tpu_custom_call.1']
    %8 = vsyncpa [#allocation3], 0
    // Predicated region
    $region2: #{tpu_custom_call.1} parent=1 // pred_check
      _
    $region3: #{tpu_custom_call.1} parent=1 // pred_check_branch
      %10 = sbr.rel (0) target = $region5
    $region4: #{tpu_custom_call.1} parent=1 // pred_region
      _
    $region5: #{tpu_custom_call.1} parent=1 // pred_fallthru
      _
    // Predicated region
    $region6: #{tpu_custom_call.1} parent=1 // pred_check
      _
    $region7: #{tpu_custom_call.1} parent=1 // pred_check_branch
      %12 = sbr.rel (0) target = $region9
    $region8: #{tpu_custom_call.1} parent=1 // pred_region
      _
    $region9: #{tpu_custom_call.1} parent=1 // pred_fallthru
      _
    // Predicated region
    $region10: #{tpu_custom_call.1} parent=1 // pred_check
      _
    $region11: #{tpu_custom_call.1} parent=1 // pred_check_branch
      %14 = sbr.rel (0) target = $region13
    $region12: #{tpu_custom_call.1} parent=1 // pred_region
      _
    $region13: #{tpu_custom_call.1} parent=1 // pred_fallthru
      _
    %v15 = vld [vmem:[%s0] sm:$0xff]
    %v16 = vld [vmem:[%s0 + $0x8] sm:$0xff]
    %v17 = vld [vmem:[%s0 + $0x10] sm:$0xff]
    %v18 = vld [vmem:[%s0 + $0x18] sm:$0xff]
    %v19 = vld [vmem:[%s0 + $0x20] sm:$0xff]
    %v20 = vld [vmem:[%s0 + $0x28] sm:$0xff]
    %v21 = vld [vmem:[%s0 + $0x30] sm:$0xff]
    %v22 = vld [vmem:[%s0 + $0x38] sm:$0xff]
    %v23 = vld [vmem:[%s0 + $0x40] sm:$0xff]
    %v24 = vld [vmem:[%s0 + $0x48] sm:$0xff]
    %v25 = vld [vmem:[%s0 + $0x50] sm:$0xff]
    %v26 = vld [vmem:[%s0 + $0x58] sm:$0xff]
    %v27 = vld [vmem:[%s0 + $0x60] sm:$0xff]
    %v28 = vld [vmem:[%s0 + $0x68] sm:$0xff]
    %v29 = vld [vmem:[%s0 + $0x70] sm:$0xff]
    %v30 = vld [vmem:[%s0 + $0x78] sm:$0xff]
    %v31 = vld [vmem:[%s0 + $0x80] sm:$0xff]
    %v32 = vld [vmem:[%s0 + $0x88] sm:$0xff]
    %v33 = vld [vmem:[%s0 + $0x90] sm:$0xff]
    %v34 = vld [vmem:[%s0 + $0x98] sm:$0xff]
    %v35 = vld [vmem:[%s0 + $0xa0] sm:$0xff]
    %v36 = vld [vmem:[%s0 + $0xa8] sm:$0xff]
    %v37 = vld [vmem:[%s0 + $0xb0] sm:$0xff]
    %v38 = vld [vmem:[%s0 + $0xb8] sm:$0xff]
    %v39 = vld [vmem:[%s0 + $0xc0] sm:$0xff]
    %v40 = vld [vmem:[%s0 + $0xc8] sm:$0xff]
    %v41 = vld [vmem:[%s0 + $0xd0] sm:$0xff]
    %v42 = vld [vmem:[%s0 + $0xd8] sm:$0xff]
    %v43 = vld [vmem:[%s0 + $0xe0] sm:$0xff]
    %v44 = vld [vmem:[%s0 + $0xe8] sm:$0xff]
    %v45 = vld [vmem:[%s0 + $0xf0] sm:$0xff]
    %v46 = vld [vmem:[%s0 + $0xf8] sm:$0xff]
    %v47 = vld [vmem:[%s0 + $0x100] sm:$0xff]
    %v48 = vld [vmem:[%s0 + $0x108] sm:$0xff]
    %v49 = vld [vmem:[%s0 + $0x110] sm:$0xff]
    %v50 = vld [vmem:[%s0 + $0x118] sm:$0xff]
    %v51 = vld [vmem:[%s0 + $0x120] sm:$0xff]
    %v52 = vld [vmem:[%s0 + $0x128] sm:$0xff]
    %v53 = vld [vmem:[%s1] sm:$0xff]
    %v54 = vld [vmem:[%s1 + $0x8] sm:$0xff]
    %v55 = vld [vmem:[%s1 + $0x10] sm:$0xff]
    %v56 = vld [vmem:[%s1 + $0x18] sm:$0xff]
    %v57 = vld [vmem:[%s1 + $0x20] sm:$0xff]
    %v58 = vld [vmem:[%s1 + $0x28] sm:$0xff]
    %v59 = vld [vmem:[%s1 + $0x30] sm:$0xff]
    %v60 = vld [vmem:[%s1 + $0x38] sm:$0xff]
    %v61 = vld [vmem:[%s2] sm:$0x1]
    %v63 = vperm.slane %v61, 0
    %vm65 = vcmask 523264
    %v67 = vsel %vm65, %v15, 0
    %v70 = vsel %vm65, %v16, 0
    %v73 = vsel %vm65, %v17, 0
    %v76 = vsel %vm65, %v18, 0
    %v79 = vsel %vm65, %v19, 0
    %v82 = vsel %vm65, %v20, 0
    %v85 = vsel %vm65, %v21, 0
    %v88 = vsel %vm65, %v22, 0
    %v91 = vsel %vm65, %v23, 0
    %v94 = vsel %vm65, %v24, 0
    %v97 = vsel %vm65, %v25, 0
    %v100 = vsel %vm65, %v26, 0
    %v103 = vsel %vm65, %v27, 0
    %v106 = vsel %vm65, %v28, 0
    %v109 = vsel %vm65, %v29, 0
    %v112 = vsel %vm65, %v30, 0
    %v115 = vsel %vm65, %v31, 0
    %v118 = vsel %vm65, %v32, 0
    %v121 = vsel %vm65, %v33, 0
    %v124 = vsel %vm65, %v34, 0
    %v127 = vsel %vm65, %v35, 0
    %v130 = vsel %vm65, %v36, 0
    %v133 = vsel %vm65, %v37, 0
    %v136 = vsel %vm65, %v38, 0
    %v139 = vsel %vm65, %v39, 0
    %v142 = vsel %vm65, %v40, 0
    %v145 = vsel %vm65, %v41, 0
    %v148 = vsel %vm65, %v42, 0
    %v151 = vsel %vm65, %v43, 0
    %v154 = vsel %vm65, %v44, 0
    %v157 = vsel %vm65, %v45, 0
    %v160 = vsel %vm65, %v46, 0
    %v163 = vsel %vm65, %v47, 0
    %v166 = vsel %vm65, %v48, 0
    %v169 = vsel %vm65, %v49, 0
    %v172 = vsel %vm65, %v50, 0
    %v175 = vsel %vm65, %v51, 0
    %v178 = vsel %vm65, %v52, 0
    %180 = vmatpush.msra.mxu0 0.0
    %181 = vmatpush.msra.mxu0 0.0
    %182 = vmatpush.msra.mxu0 0.0
    %183 = vmatpush.msra.mxu0 0.0
    %184 = vmatpush.msra.mxu0 0.0
    %185 = vmatpush.msra.mxu0 0.0
    %186 = vmatpush.msra.mxu0 0.0
    %187 = vmatpush.msra.mxu0 0.0
    %188 = vmatpush.msra.mxu0 %v60
    %189 = vmatpush.msra.mxu0 %v59
    %190 = vmatpush.msra.mxu0 %v58
    %191 = vmatpush.msra.mxu0 %v57
    %192 = vmatpush.msra.mxu0 %v56
    %193 = vmatpush.msra.mxu0 %v55
    %194 = vmatpush.msra.mxu0 %v54
    %195 = vmatpush.msra.mxu0 %v53
    %196 = vmatmul.f32.gmra.mxu0 %v67
    %v197 = vpop.f32.mrf.mxu0
    %v198 = vadd.f32 %v63, %v197
    %199 = vmatmul.f32.gmra.mxu0 %v70
    %v200 = vpop.f32.mrf.mxu0
    %v201 = vadd.f32 %v63, %v200
    %202 = vmatmul.f32.gmra.mxu0 %v73
    %v203 = vpop.f32.mrf.mxu0
    %v204 = vadd.f32 %v63, %v203
    %205 = vmatmul.f32.gmra.mxu0 %v76
    %v206 = vpop.f32.mrf.mxu0
    %v207 = vadd.f32 %v63, %v206
    %208 = vmatmul.f32.gmra.mxu0 %v79
    %v209 = vpop.f32.mrf.mxu0
    %v210 = vadd.f32 %v63, %v209
    %211 = vmatmul.f32.gmra.mxu0 %v82
    %v212 = vpop.f32.mrf.mxu0
    %v213 = vadd.f32 %v63, %v212
    %214 = vmatmul.f32.gmra.mxu0 %v85
    %v215 = vpop.f32.mrf.mxu0
    %v216 = vadd.f32 %v63, %v215
    %217 = vmatmul.f32.gmra.mxu0 %v88
    %v218 = vpop.f32.mrf.mxu0
    %v219 = vadd.f32 %v63, %v218
    %220 = vmatmul.f32.gmra.mxu0 %v91
    %v221 = vpop.f32.mrf.mxu0
    %v222 = vadd.f32 %v63, %v221
    %223 = vmatmul.f32.gmra.mxu0 %v94
    %v224 = vpop.f32.mrf.mxu0
    %v225 = vadd.f32 %v63, %v224
    %226 = vmatmul.f32.gmra.mxu0 %v97
    %v227 = vpop.f32.mrf.mxu0
    %v228 = vadd.f32 %v63, %v227
    %229 = vmatmul.f32.gmra.mxu0 %v100
    %v230 = vpop.f32.mrf.mxu0
    %v231 = vadd.f32 %v63, %v230
    %232 = vmatmul.f32.gmra.mxu0 %v103
    %v233 = vpop.f32.mrf.mxu0
    %v234 = vadd.f32 %v63, %v233
    %235 = vmatmul.f32.gmra.mxu0 %v106
    %v236 = vpop.f32.mrf.mxu0
    %v237 = vadd.f32 %v63, %v236
    %238 = vmatmul.f32.gmra.mxu0 %v109
    %v239 = vpop.f32.mrf.mxu0
    %v240 = vadd.f32 %v63, %v239
    %241 = vmatmul.f32.gmra.mxu0 %v112
    %v242 = vpop.f32.mrf.mxu0
    %v243 = vadd.f32 %v63, %v242
    %244 = vmatmul.f32.gmra.mxu0 %v115
    %v245 = vpop.f32.mrf.mxu0
    %v246 = vadd.f32 %v63, %v245
    %247 = vmatmul.f32.gmra.mxu0 %v118
    %v248 = vpop.f32.mrf.mxu0
    %v249 = vadd.f32 %v63, %v248
    %250 = vmatmul.f32.gmra.mxu0 %v121
    %v251 = vpop.f32.mrf.mxu0
    %v252 = vadd.f32 %v63, %v251
    %253 = vmatmul.f32.gmra.mxu0 %v124
    %v254 = vpop.f32.mrf.mxu0
    %v255 = vadd.f32 %v63, %v254
    %256 = vmatmul.f32.gmra.mxu0 %v127
    %v257 = vpop.f32.mrf.mxu0
    %v258 = vadd.f32 %v63, %v257
    %259 = vmatmul.f32.gmra.mxu0 %v130
    %v260 = vpop.f32.mrf.mxu0
    %v261 = vadd.f32 %v63, %v260
    %262 = vmatmul.f32.gmra.mxu0 %v133
    %v263 = vpop.f32.mrf.mxu0
    %v264 = vadd.f32 %v63, %v263
    %265 = vmatmul.f32.gmra.mxu0 %v136
    %v266 = vpop.f32.mrf.mxu0
    %v267 = vadd.f32 %v63, %v266
    %268 = vmatmul.f32.gmra.mxu0 %v139
    %v269 = vpop.f32.mrf.mxu0
    %v270 = vadd.f32 %v63, %v269
    %271 = vmatmul.f32.gmra.mxu0 %v142
    %v272 = vpop.f32.mrf.mxu0
    %v273 = vadd.f32 %v63, %v272
    %274 = vmatmul.f32.gmra.mxu0 %v145
    %v275 = vpop.f32.mrf.mxu0
    %v276 = vadd.f32 %v63, %v275
    %277 = vmatmul.f32.gmra.mxu0 %v148
    %v278 = vpop.f32.mrf.mxu0
    %v279 = vadd.f32 %v63, %v278
    %280 = vmatmul.f32.gmra.mxu0 %v151
    %v281 = vpop.f32.mrf.mxu0
    %v282 = vadd.f32 %v63, %v281
    %283 = vmatmul.f32.gmra.mxu0 %v154
    %v284 = vpop.f32.mrf.mxu0
    %v285 = vadd.f32 %v63, %v284
    %286 = vmatmul.f32.gmra.mxu0 %v157
    %v287 = vpop.f32.mrf.mxu0
    %v288 = vadd.f32 %v63, %v287
    %289 = vmatmul.f32.gmra.mxu0 %v160
    %v290 = vpop.f32.mrf.mxu0
    %v291 = vadd.f32 %v63, %v290
    %292 = vmatmul.f32.gmra.mxu0 %v163
    %v293 = vpop.f32.mrf.mxu0
    %v294 = vadd.f32 %v63, %v293
    %295 = vmatmul.f32.gmra.mxu0 %v166
    %v296 = vpop.f32.mrf.mxu0
    %v297 = vadd.f32 %v63, %v296
    %298 = vmatmul.f32.gmra.mxu0 %v169
    %v299 = vpop.f32.mrf.mxu0
    %v300 = vadd.f32 %v63, %v299
    %301 = vmatmul.f32.gmra.mxu0 %v172
    %v302 = vpop.f32.mrf.mxu0
    %v303 = vadd.f32 %v63, %v302
    %304 = vmatmul.f32.gmra.mxu0 %v175
    %v305 = vpop.f32.mrf.mxu0
    %v306 = vadd.f32 %v63, %v305
    %307 = vmatmul.f32.gmra.mxu0 %v178
    %v308 = vpop.f32.mrf.mxu0
    %v309 = vadd.f32 %v63, %v308
    %310 = vdwg.mxu0
    %v311 = vand.u32 2147483647, %v198
    %v312 = vand.u32 2147483647, %v201
    %v313 = vand.u32 2147483647, %v204
    %v314 = vand.u32 2147483647, %v207
    %v315 = vand.u32 2147483647, %v210
    %v316 = vand.u32 2147483647, %v213
    %v317 = vand.u32 2147483647, %v216
    %v318 = vand.u32 2147483647, %v219
    %v319 = vand.u32 2147483647, %v222
    %v320 = vand.u32 2147483647, %v225
    %v321 = vand.u32 2147483647, %v228
    %v322 = vand.u32 2147483647, %v231
    %v323 = vand.u32 2147483647, %v234
    %v324 = vand.u32 2147483647, %v237
    %v325 = vand.u32 2147483647, %v240
    %v326 = vand.u32 2147483647, %v243
    %v327 = vand.u32 2147483647, %v246
    %v328 = vand.u32 2147483647, %v249
    %v329 = vand.u32 2147483647, %v252
    %v330 = vand.u32 2147483647, %v255
    %v331 = vand.u32 2147483647, %v258
    %v332 = vand.u32 2147483647, %v261
    %v333 = vand.u32 2147483647, %v264
    %v334 = vand.u32 2147483647, %v267
    %v335 = vand.u32 2147483647, %v270
    %v336 = vand.u32 2147483647, %v273
    %v337 = vand.u32 2147483647, %v276
    %v338 = vand.u32 2147483647, %v279
    %v339 = vand.u32 2147483647, %v282
    %v340 = vand.u32 2147483647, %v285
    %v341 = vand.u32 2147483647, %v288
    %v342 = vand.u32 2147483647, %v291
    %v343 = vand.u32 2147483647, %v294
    %v344 = vand.u32 2147483647, %v297
    %v345 = vand.u32 2147483647, %v300
    %v346 = vand.u32 2147483647, %v303
    %v347 = vand.u32 2147483647, %v306
    %v348 = vand.u32 2147483647, %v309
    %v349 = vadd.f32 %v311, 1.0
    %v350 = vadd.f32 %v312, 1.0
    %v351 = vadd.f32 %v313, 1.0
    %v352 = vadd.f32 %v314, 1.0
    %v353 = vadd.f32 %v315, 1.0
    %v354 = vadd.f32 %v316, 1.0
    %v355 = vadd.f32 %v317, 1.0
    %v356 = vadd.f32 %v318, 1.0
    %v357 = vadd.f32 %v319, 1.0
    %v358 = vadd.f32 %v320, 1.0
    %v359 = vadd.f32 %v321, 1.0
    %v360 = vadd.f32 %v322, 1.0
    %v361 = vadd.f32 %v323, 1.0
    %v362 = vadd.f32 %v324, 1.0
    %v363 = vadd.f32 %v325, 1.0
    %v364 = vadd.f32 %v326, 1.0
    %v365 = vadd.f32 %v327, 1.0
    %v366 = vadd.f32 %v328, 1.0
    %v367 = vadd.f32 %v329, 1.0
    %v368 = vadd.f32 %v330, 1.0
    %v369 = vadd.f32 %v331, 1.0
    %v370 = vadd.f32 %v332, 1.0
    %v371 = vadd.f32 %v333, 1.0
    %v372 = vadd.f32 %v334, 1.0
    %v373 = vadd.f32 %v335, 1.0
    %v374 = vadd.f32 %v336, 1.0
    %v375 = vadd.f32 %v337, 1.0
    %v376 = vadd.f32 %v338, 1.0
    %v377 = vadd.f32 %v339, 1.0
    %v378 = vadd.f32 %v340, 1.0
    %v379 = vadd.f32 %v341, 1.0
    %v380 = vadd.f32 %v342, 1.0
    %v381 = vadd.f32 %v343, 1.0
    %v382 = vadd.f32 %v344, 1.0
    %v383 = vadd.f32 %v345, 1.0
    %v384 = vadd.f32 %v346, 1.0
    %v385 = vadd.f32 %v347, 1.0
    %v386 = vadd.f32 %v348, 1.0
    %v387 = vmul.f32 %v349, %v198
    %v388 = vmul.f32 %v350, %v201
    %v389 = vmul.f32 %v351, %v204
    %v390 = vmul.f32 %v352, %v207
    %v391 = vmul.f32 %v353, %v210
    %v392 = vmul.f32 %v354, %v213
    %v393 = vmul.f32 %v355, %v216
    %v394 = vmul.f32 %v356, %v219
    %v395 = vmul.f32 %v357, %v222
    %v396 = vmul.f32 %v358, %v225
    %v397 = vmul.f32 %v359, %v228
    %v398 = vmul.f32 %v360, %v231
    %v399 = vmul.f32 %v361, %v234
    %v400 = vmul.f32 %v362, %v237
    %v401 = vmul.f32 %v363, %v240
    %v402 = vmul.f32 %v364, %v243
    %v403 = vmul.f32 %v365, %v246
    %v404 = vmul.f32 %v366, %v249
    %v405 = vmul.f32 %v367, %v252
    %v406 = vmul.f32 %v368, %v255
    %v407 = vmul.f32 %v369, %v258
    %v408 = vmul.f32 %v370, %v261
    %v409 = vmul.f32 %v371, %v264
    %v410 = vmul.f32 %v372, %v267
    %v411 = vmul.f32 %v373, %v270
    %v412 = vmul.f32 %v374, %v273
    %v413 = vmul.f32 %v375, %v276
    %v414 = vmul.f32 %v376, %v279
    %v415 = vmul.f32 %v377, %v282
    %v416 = vmul.f32 %v378, %v285
    %v417 = vmul.f32 %v379, %v288
    %v418 = vmul.f32 %v380, %v291
    %v419 = vmul.f32 %v381, %v294
    %v420 = vmul.f32 %v382, %v297
    %v421 = vmul.f32 %v383, %v300
    %v422 = vmul.f32 %v384, %v303
    %v423 = vmul.f32 %v385, %v306
    %v424 = vmul.f32 %v386, %v309
    %v425 = vmul.f32 %v387, %v387
    %v426 = vmul.f32 %v388, %v388
    %v427 = vmul.f32 %v389, %v389
    %v428 = vmul.f32 %v390, %v390
    %v429 = vmul.f32 %v391, %v391
    %v430 = vmul.f32 %v392, %v392
    %v431 = vmul.f32 %v393, %v393
    %v432 = vmul.f32 %v394, %v394
    %v433 = vmul.f32 %v395, %v395
    %v434 = vmul.f32 %v396, %v396
    %v435 = vmul.f32 %v397, %v397
    %v436 = vmul.f32 %v398, %v398
    %v437 = vmul.f32 %v399, %v399
    %v438 = vmul.f32 %v400, %v400
    %v439 = vmul.f32 %v401, %v401
    %v440 = vmul.f32 %v402, %v402
    %v441 = vmul.f32 %v403, %v403
    %v442 = vmul.f32 %v404, %v404
    %v443 = vmul.f32 %v405, %v405
    %v444 = vmul.f32 %v406, %v406
    %v445 = vmul.f32 %v407, %v407
    %v446 = vmul.f32 %v408, %v408
    %v447 = vmul.f32 %v409, %v409
    %v448 = vmul.f32 %v410, %v410
    %v449 = vmul.f32 %v411, %v411
    %v450 = vmul.f32 %v412, %v412
    %v451 = vmul.f32 %v413, %v413
    %v452 = vmul.f32 %v414, %v414
    %v453 = vmul.f32 %v415, %v415
    %v454 = vmul.f32 %v416, %v416
    %v455 = vmul.f32 %v417, %v417
    %v456 = vmul.f32 %v418, %v418
    %v457 = vmul.f32 %v419, %v419
    %v458 = vmul.f32 %v420, %v420
    %v459 = vmul.f32 %v421, %v421
    %v460 = vmul.f32 %v422, %v422
    %v461 = vmul.f32 %v423, %v423
    %v462 = vmul.f32 %v424, %v424
    %v463 = vmul.f32 %v425, -900.0
    %v464 = vmul.f32 %v426, -900.0
    %v465 = vmul.f32 %v427, -900.0
    %v466 = vmul.f32 %v428, -900.0
    %v467 = vmul.f32 %v429, -900.0
    %v468 = vmul.f32 %v430, -900.0
    %v469 = vmul.f32 %v431, -900.0
    %v470 = vmul.f32 %v432, -900.0
    %v471 = vmul.f32 %v433, -900.0
    %v472 = vmul.f32 %v434, -900.0
    %v473 = vmul.f32 %v435, -900.0
    %v474 = vmul.f32 %v436, -900.0
    %v475 = vmul.f32 %v437, -900.0
    %v476 = vmul.f32 %v438, -900.0
    %v477 = vmul.f32 %v439, -900.0
    %v478 = vmul.f32 %v440, -900.0
    %v479 = vmul.f32 %v441, -900.0
    %v480 = vmul.f32 %v442, -900.0
    %v481 = vmul.f32 %v443, -900.0
    %v482 = vmul.f32 %v444, -900.0
    %v483 = vmul.f32 %v445, -900.0
    %v484 = vmul.f32 %v446, -900.0
    %v485 = vmul.f32 %v447, -900.0
    %v486 = vmul.f32 %v448, -900.0
    %v487 = vmul.f32 %v449, -900.0
    %v488 = vmul.f32 %v450, -900.0
    %v489 = vmul.f32 %v451, -900.0
    %v490 = vmul.f32 %v452, -900.0
    %v491 = vmul.f32 %v453, -900.0
    %v492 = vmul.f32 %v454, -900.0
    %v493 = vmul.f32 %v455, -900.0
    %v494 = vmul.f32 %v456, -900.0
    %v495 = vmul.f32 %v457, -900.0
    %v496 = vmul.f32 %v458, -900.0
    %v497 = vmul.f32 %v459, -900.0
    %v498 = vmul.f32 %v460, -900.0
    %v499 = vmul.f32 %v461, -900.0
    %v500 = vmul.f32 %v462, -900.0
    %v501 = vmul.f32 %v463, 1.442695
    %v502 = vpow.pop %v501
    %v503 = vmul.f32 %v464, 1.442695
    %v504 = vpow.pop %v503
    %v505 = vmul.f32 %v465, 1.442695
    %v506 = vpow.pop %v505
    %v507 = vmul.f32 %v466, 1.442695
    %v508 = vpow.pop %v507
    %v509 = vmul.f32 %v467, 1.442695
    %v510 = vpow.pop %v509
    %v511 = vmul.f32 %v468, 1.442695
    %v512 = vpow.pop %v511
    %v513 = vmul.f32 %v469, 1.442695
    %v514 = vpow.pop %v513
    %v515 = vmul.f32 %v470, 1.442695
    %v516 = vpow.pop %v515
    %v517 = vmul.f32 %v471, 1.442695
    %v518 = vpow.pop %v517
    %v519 = vmul.f32 %v472, 1.442695
    %v520 = vpow.pop %v519
    %v521 = vmul.f32 %v473, 1.442695
    %v522 = vpow.pop %v521
    %v523 = vmul.f32 %v474, 1.442695
    %v524 = vpow.pop %v523
    %v525 = vmul.f32 %v475, 1.442695
    %v526 = vpow.pop %v525
    %v527 = vmul.f32 %v476, 1.442695
    %v528 = vpow.pop %v527
    %v529 = vmul.f32 %v477, 1.442695
    %v530 = vpow.pop %v529
    %v531 = vmul.f32 %v478, 1.442695
    %v532 = vpow.pop %v531
    %v533 = vmul.f32 %v479, 1.442695
    %v534 = vpow.pop %v533
    %v535 = vmul.f32 %v480, 1.442695
    %v536 = vpow.pop %v535
    %v537 = vmul.f32 %v481, 1.442695
    %v538 = vpow.pop %v537
    %v539 = vmul.f32 %v482, 1.442695
    %v540 = vpow.pop %v539
    %v541 = vmul.f32 %v483, 1.442695
    %v542 = vpow.pop %v541
    %v543 = vmul.f32 %v484, 1.442695
    %v544 = vpow.pop %v543
    %v545 = vmul.f32 %v485, 1.442695
    %v546 = vpow.pop %v545
    %v547 = vmul.f32 %v486, 1.442695
    %v548 = vpow.pop %v547
    %v549 = vmul.f32 %v487, 1.442695
    %v550 = vpow.pop %v549
    %v551 = vmul.f32 %v488, 1.442695
    %v552 = vpow.pop %v551
    %v553 = vmul.f32 %v489, 1.442695
    %v554 = vpow.pop %v553
    %v555 = vmul.f32 %v490, 1.442695
    %v556 = vpow.pop %v555
    %v557 = vmul.f32 %v491, 1.442695
    %v558 = vpow.pop %v557
    %v559 = vmul.f32 %v492, 1.442695
    %v560 = vpow.pop %v559
    %v561 = vmul.f32 %v493, 1.442695
    %v562 = vpow.pop %v561
    %v563 = vmul.f32 %v494, 1.442695
    %v564 = vpow.pop %v563
    %v565 = vmul.f32 %v495, 1.442695
    %v566 = vpow.pop %v565
    %v567 = vmul.f32 %v496, 1.442695
    %v568 = vpow.pop %v567
    %v569 = vmul.f32 %v497, 1.442695
    %v570 = vpow.pop %v569
    %v571 = vmul.f32 %v498, 1.442695
    %v572 = vpow.pop %v571
    %v573 = vmul.f32 %v499, 1.442695
    %v574 = vpow.pop %v573
    %v575 = vmul.f32 %v500, 1.442695
    %v576 = vpow.pop %v575
    %577 = vst [vmem:[#allocation2] sm:$0xff] %v502
    %578 = vst [vmem:[#allocation2 + $0x8] sm:$0xff] %v504
    %579 = vst [vmem:[#allocation2 + $0x10] sm:$0xff] %v506
    %580 = vst [vmem:[#allocation2 + $0x18] sm:$0xff] %v508
    %581 = vst [vmem:[#allocation2 + $0x20] sm:$0xff] %v510
    %582 = vst [vmem:[#allocation2 + $0x28] sm:$0xff] %v512
    %583 = vst [vmem:[#allocation2 + $0x30] sm:$0xff] %v514
    %584 = vst [vmem:[#allocation2 + $0x38] sm:$0xff] %v516
    %585 = vst [vmem:[#allocation2 + $0x40] sm:$0xff] %v518
    %586 = vst [vmem:[#allocation2 + $0x48] sm:$0xff] %v520
    %587 = vst [vmem:[#allocation2 + $0x50] sm:$0xff] %v522
    %588 = vst [vmem:[#allocation2 + $0x58] sm:$0xff] %v524
    %589 = vst [vmem:[#allocation2 + $0x60] sm:$0xff] %v526
    %590 = vst [vmem:[#allocation2 + $0x68] sm:$0xff] %v528
    %591 = vst [vmem:[#allocation2 + $0x70] sm:$0xff] %v530
    %592 = vst [vmem:[#allocation2 + $0x78] sm:$0xff] %v532
    %593 = vst [vmem:[#allocation2 + $0x80] sm:$0xff] %v534
    %594 = vst [vmem:[#allocation2 + $0x88] sm:$0xff] %v536
    %595 = vst [vmem:[#allocation2 + $0x90] sm:$0xff] %v538
    %596 = vst [vmem:[#allocation2 + $0x98] sm:$0xff] %v540
    %597 = vst [vmem:[#allocation2 + $0xa0] sm:$0xff] %v542
    %598 = vst [vmem:[#allocation2 + $0xa8] sm:$0xff] %v544
    %599 = vst [vmem:[#allocation2 + $0xb0] sm:$0xff] %v546
    %600 = vst [vmem:[#allocation2 + $0xb8] sm:$0xff] %v548
    %601 = vst [vmem:[#allocation2 + $0xc0] sm:$0xff] %v550
    %602 = vst [vmem:[#allocation2 + $0xc8] sm:$0xff] %v552
    %603 = vst [vmem:[#allocation2 + $0xd0] sm:$0xff] %v554
    %604 = vst [vmem:[#allocation2 + $0xd8] sm:$0xff] %v556
    %605 = vst [vmem:[#allocation2 + $0xe0] sm:$0xff] %v558
    %606 = vst [vmem:[#allocation2 + $0xe8] sm:$0xff] %v560
    %607 = vst [vmem:[#allocation2 + $0xf0] sm:$0xff] %v562
    %608 = vst [vmem:[#allocation2 + $0xf8] sm:$0xff] %v564
    %609 = vst [vmem:[#allocation2 + $0x100] sm:$0xff] %v566
    %610 = vst [vmem:[#allocation2 + $0x108] sm:$0xff] %v568
    %611 = vst [vmem:[#allocation2 + $0x110] sm:$0xff] %v570
    %612 = vst [vmem:[#allocation2 + $0x118] sm:$0xff] %v572
    %613 = vst [vmem:[#allocation2 + $0x120] sm:$0xff] %v574
    %614 = vst [vmem:[#allocation2 + $0x128] sm:$0xff] %v576
    // Predicated region
    $region14: #{tpu_custom_call.1} parent=1 // pred_check
      _
    $region15: #{tpu_custom_call.1} parent=1 // pred_check_branch
      %616 = sbr.rel (0) target = $region17
    $region16: #{tpu_custom_call.1} parent=1 // pred_region
      %618 = vsyncadd [#allocation3], 0
      %s619 = sshll.u32 [#allocation2], 4
      %s620 = int_to_ptr.vmem [resolvable:$true] %s619
      %s621 = sshll.u32 %s3, 4
      %s622 = int_to_ptr.hbm [resolvable:$true] %s621
      %627 = dma.vmem_to_hbm [thread:$0]  %s620, 4864, %s622, [#allocation3], 128, 128, 8
    $region17: #{tpu_custom_call.1} parent=1 // pred_fallthru
      _
    // Predicated region
    $region18: #{tpu_custom_call.1} parent=1 // pred_check
      _
    $region19: #{tpu_custom_call.1} parent=1 // pred_check_branch
      %629 = sbr.rel (0) target = $region21
    $region20: #{tpu_custom_call.1} parent=1 // pred_region
      %631 = dma.done [#allocation3], 4864
    $region21: #{tpu_custom_call.1} parent=1 // pred_fallthru
      _
    %632 = vsyncpa [#allocation3], 1

</llo_original>
